<compile_context>
chip_gen: v5e
topology: v5e:2x2
jax: 0.10.0
libtpu: 0.0.40
codegen_flags: <defaults>
</compile_context>

<pallas_src>
import functools

import jax
import jax.numpy as jnp
from jax.experimental import pallas as pl
from jax.experimental.pallas import tpu as pltpu


def _round_up(x, m):
    return (x + m - 1) // m * m


def std_pool_kernel(x_ref, o_ref, sum_ref, sq_ref, shift_ref, *, hw, hw_tile, chunk):
    t = pl.program_id(1)
    n_t = pl.num_programs(1)

    @pl.when(t == 0)
    def _():
        # Per-row shift (first spatial element).  Any shift is algebraically
        # valid; one near the mean kills cancellation in the one-pass variance.
        shift_ref[...] = x_ref[:, 0:1].astype(jnp.float32)
        sum_ref[...] = jnp.zeros_like(sum_ref)
        sq_ref[...] = jnp.zeros_like(sq_ref)

    def accumulate(masked):
        shift = shift_ref[...]                                   # (R, 1) f32
        start = 0
        while start < hw_tile:                                   # static 128-aligned chunks
            size = min(chunk, hw_tile - start)
            xc = x_ref[:, start:start + size].astype(jnp.float32)
            d = xc - shift
            if masked:
                lane = jax.lax.broadcasted_iota(jnp.int32, d.shape, 1)
                valid = (t * hw_tile + start + lane) < hw
                d = jnp.where(valid, d, 0.0)
            sum_ref[...] += jnp.sum(d, axis=1, keepdims=True)
            sq_ref[...] += jnp.sum(d * d, axis=1, keepdims=True)
            start += size

    if hw % hw_tile != 0:
        # Steady-state tiles run mask-free; only the last (padded) tile pays
        # for the iota/compare/select.
        @pl.when(t < n_t - 1)
        def _():
            accumulate(masked=False)

        @pl.when(t == n_t - 1)
        def _():
            accumulate(masked=True)
    else:
        accumulate(masked=False)

    @pl.when(t == n_t - 1)
    def _():
        inv_n = 1.0 / hw
        # hw == 1 -> NaN, matching torch's unbiased std of a single element.
        inv_nm1 = 1.0 / (hw - 1) if hw > 1 else float("nan")
        s = sum_ref[...]
        q = sq_ref[...]
        var = (q - (s * s) * inv_n) * inv_nm1
        o_ref[...] = jnp.sqrt(jnp.maximum(var, 0.0)).astype(o_ref.dtype)


def std_pool(x, *, max_hw_tile=None, slab_budget_bytes=None, vmem_limit_bytes=None):
    """x: (B, C, H, W).  Returns unbiased spatial std of shape (B, C, 1, 1)."""
    b, c, h, w = x.shape
    hw = h * w
    bc = b * c
    x2 = x.reshape(bc, hw)

    itemsize = jnp.dtype(x.dtype).itemsize
    pack = max(8, 32 // itemsize)              # sublane pack: 8 f32 / 16 bf16 / 32 int8

    # Per-generation VMEM budgets.
    try:
        vmem_cap = pltpu.get_tpu_info().vmem_capacity_bytes
    except Exception:
        vmem_cap = 64 * 1024 * 1024            # conservative (v7x-sized) fallback
    if vmem_cap >= 100 * 1024 * 1024:          # v5e / v6e: 128 MiB physical
        default_slab, default_limit = 16 * 1024 * 1024, 80 * 1024 * 1024
    else:                                      # v7x: 64 MiB physical
        default_slab, default_limit = 8 * 1024 * 1024, 40 * 1024 * 1024
    slab = slab_budget_bytes or default_slab
    vmem_limit = vmem_limit_bytes or default_limit

    # Lane (spatial) tile: as much of HW as fits the slab budget even at the
    # minimum row count; always a multiple of 128 so only the tail is partial.
    hw_pad = _round_up(hw, 128)
    lane_cap = max(128, (slab // (pack * itemsize)) // 128 * 128)
    hw_tile = min(hw_pad, lane_cap)
    if max_hw_tile is not None:
        hw_tile = min(hw_tile, max(128, _round_up(max_hw_tile, 128)))
    n_t = pl.cdiv(hw, hw_tile)

    # Row tile: fill the remaining slab budget; keep >= 2 blocks on the
    # parallel axis when the row count allows (v7x megacore).
    bc_pad = _round_up(bc, pack)
    r_budget = max(pack, (slab // (hw_tile * itemsize)) // pack * pack)
    r_tile = min(r_budget, bc_pad, 1024)
    if bc_pad >= 2 * pack:
        r_tile = max(pack, min(r_tile, _round_up(pl.cdiv(bc_pad, 2), pack)))
    n_r = pl.cdiv(bc, r_tile)

    # In-kernel lane chunk keeps elementwise temporaries small (~<= 0.5 MiB).
    chunk = max(128, min(hw_tile, ((128 * 1024) // r_tile) // 128 * 128))

    kernel = functools.partial(std_pool_kernel, hw=hw, hw_tile=hw_tile, chunk=chunk)

    out = pl.pallas_call(
        kernel,
        out_shape=jax.ShapeDtypeStruct((bc, 1), x.dtype),
        grid=(n_r, n_t),
        in_specs=[pl.BlockSpec((r_tile, hw_tile), lambda r, t: (r, t))],
        out_specs=pl.BlockSpec((r_tile, 1), lambda r, t: (r, 0)),
        scratch_shapes=[pltpu.VMEM((r_tile, 1), jnp.float32),   # sum(x - shift)
                        pltpu.VMEM((r_tile, 1), jnp.float32),   # sum((x - shift)^2)
                        pltpu.VMEM((r_tile, 1), jnp.float32)],  # shift
        compiler_params=pltpu.CompilerParams(
            dimension_semantics=("parallel", "arbitrary"),
            vmem_limit_bytes=vmem_limit),
        cost_estimate=pl.CostEstimate(
            flops=4 * bc * hw,
            transcendentals=bc,
            bytes_accessed=x.size * itemsize + bc * itemsize),
    )(x2)
    return out.reshape(b, c, 1, 1)


def std_pool_reference(x):
    b, c, _, _ = x.shape
    return jnp.std(x.reshape(b, c, -1).astype(jnp.float32),
                   axis=2, ddof=1).astype(x.dtype).reshape(b, c, 1, 1)


if __name__ == "__main__":
    key = jax.random.PRNGKey(0)
    k1, k2, k3 = jax.random.split(key, 3)

    # Shape implied by the module's forward (single spatial-tile, single row-tile).
    x1 = jax.random.normal(k1, (2, 4, 16, 16), dtype=jnp.float32)
    y1 = jax.block_until_ready(std_pool(x1))
    assert y1.shape == (2, 4, 1, 1)
    assert jnp.allclose(y1, std_pool_reference(x1), atol=1e-4, rtol=1e-4)

    # Multi-spatial-tile path with a masked tail + two row-tiles.
    x2 = jax.random.normal(k2, (2, 8, 20, 20), dtype=jnp.float32)
    y2 = jax.block_until_ready(std_pool(x2, max_hw_tile=128))
    assert y2.shape == (2, 8, 1, 1)
    assert jnp.allclose(y2, std_pool_reference(x2), atol=1e-4, rtol=1e-4)

    # Large-mean input exercises the shifted (cancellation-safe) accumulation.
    x3 = 100.0 + 0.1 * jax.random.normal(k3, (2, 8, 20, 20), dtype=jnp.float32)
    y3 = jax.block_until_ready(std_pool(x3))
    assert y3.shape == (2, 8, 1, 1)
    assert jnp.allclose(y3, std_pool_reference(x3), atol=1e-4, rtol=1e-3)

    print("KERNEL_OK")
</pallas_src>

<mosaic_0001>
module attributes {stable_mosaic.version = 11 : i64} {
  func.func @std_pool_kernel(%arg0: i32, %arg1: i32, %arg2: memref<8x256xf32, #tpu.memory_space<vmem>>, %arg3: memref<8x1xf32, #tpu.memory_space<vmem>>, %arg4: memref<8x1xf32, #tpu.memory_space<vmem>>, %arg5: memref<8x1xf32, #tpu.memory_space<vmem>>, %arg6: memref<8x1xf32, #tpu.memory_space<vmem>>) attributes {dimension_semantics = [#tpu.dimension_semantics<parallel>, #tpu.dimension_semantics<arbitrary>], iteration_bounds = array<i64: 1, 1>, scalar_prefetch = 0 : i64, scratch_operands = 3 : i64, tpu.core_type = #tpu.core_type<tc>, window_params = [{transform_indices = @transform_0, window_bounds = array<i64: 8, 256>}, {transform_indices = @transform_1, window_bounds = array<i64: 8, 1>}]} {
    %c0_i32 = arith.constant 0 : i32
    %0 = arith.cmpi eq, %arg1, %c0_i32 : i32
    %1 = arith.extui %0 : i1 to i32
    %c0_i32_0 = arith.constant 0 : i32
    %2 = arith.cmpi ne, %1, %c0_i32_0 : i32
    scf.if %2 {
      %c0_15 = arith.constant 0 : index
      %c0_16 = arith.constant 0 : index
      %21 = vector.load %arg2[%c0_15, %c0_16] : memref<8x256xf32, #tpu.memory_space<vmem>>, vector<8x1xf32>
      %c0_17 = arith.constant 0 : index
      %c0_18 = arith.constant 0 : index
      %22 = vector.load %arg6[%c0_17, %c0_18] : memref<8x1xf32, #tpu.memory_space<vmem>>, vector<8x1xf32>
      tpu.vector_store %arg6[%c0_17, %c0_18], %21 {strides = array<i32>} : memref<8x1xf32, #tpu.memory_space<vmem>>, vector<8x1xf32>,
      %cst_19 = arith.constant 0.000000e+00 : f32
      %23 = vector.broadcast %cst_19 : f32 to vector<8x1xf32>
      %c0_20 = arith.constant 0 : index
      %c0_21 = arith.constant 0 : index
      %24 = vector.load %arg4[%c0_20, %c0_21] : memref<8x1xf32, #tpu.memory_space<vmem>>, vector<8x1xf32>
      tpu.vector_store %arg4[%c0_20, %c0_21], %23 {strides = array<i32>} : memref<8x1xf32, #tpu.memory_space<vmem>>, vector<8x1xf32>,
      %cst_22 = arith.constant 0.000000e+00 : f32
      %25 = vector.broadcast %cst_22 : f32 to vector<8x1xf32>
      %c0_23 = arith.constant 0 : index
      %c0_24 = arith.constant 0 : index
      %26 = vector.load %arg5[%c0_23, %c0_24] : memref<8x1xf32, #tpu.memory_space<vmem>>, vector<8x1xf32>
      tpu.vector_store %arg5[%c0_23, %c0_24], %25 {strides = array<i32>} : memref<8x1xf32, #tpu.memory_space<vmem>>, vector<8x1xf32>,
    } else {
    }
    %c0 = arith.constant 0 : index
    %c0_1 = arith.constant 0 : index
    %3 = vector.load %arg6[%c0, %c0_1] : memref<8x1xf32, #tpu.memory_space<vmem>>, vector<8x1xf32>
    %c0_2 = arith.constant 0 : index
    %c0_3 = arith.constant 0 : index
    %4 = vector.load %arg2[%c0_2, %c0_3] : memref<8x256xf32, #tpu.memory_space<vmem>>, vector<8x256xf32>
    %5 = vector.broadcast %3 : vector<8x1xf32> to vector<8x256xf32>
    %6 = arith.subf %4, %5 : vector<8x256xf32>
    %c0_4 = arith.constant 0 : index
    %c0_5 = arith.constant 0 : index
    %7 = vector.load %arg4[%c0_4, %c0_5] : memref<8x1xf32, #tpu.memory_space<vmem>>, vector<8x1xf32>
    %cst = arith.constant dense<0.000000e+00> : vector<8xf32>
    %8 = vector.multi_reduction <add>, %6, %cst [1] : vector<8x256xf32> to vector<8xf32>
    %9 = vector.shape_cast %8 : vector<8xf32> to vector<8x1xf32>
    %10 = arith.addf %7, %9 : vector<8x1xf32>
    %c0_6 = arith.constant 0 : index
    %c0_7 = arith.constant 0 : index
    %11 = vector.load %arg4[%c0_6, %c0_7] : memref<8x1xf32, #tpu.memory_space<vmem>>, vector<8x1xf32>
    tpu.vector_store %arg4[%c0_6, %c0_7], %10 {strides = array<i32>} : memref<8x1xf32, #tpu.memory_space<vmem>>, vector<8x1xf32>,
    %c0_8 = arith.constant 0 : index
    %c0_9 = arith.constant 0 : index
    %12 = vector.load %arg5[%c0_8, %c0_9] : memref<8x1xf32, #tpu.memory_space<vmem>>, vector<8x1xf32>
    %13 = arith.mulf %6, %6 : vector<8x256xf32>
    %cst_10 = arith.constant dense<0.000000e+00> : vector<8xf32>
    %14 = vector.multi_reduction <add>, %13, %cst_10 [1] : vector<8x256xf32> to vector<8xf32>
    %15 = vector.shape_cast %14 : vector<8xf32> to vector<8x1xf32>
    %16 = arith.addf %12, %15 : vector<8x1xf32>
    %c0_11 = arith.constant 0 : index
    %c0_12 = arith.constant 0 : index
    %17 = vector.load %arg5[%c0_11, %c0_12] : memref<8x1xf32, #tpu.memory_space<vmem>>, vector<8x1xf32>
    tpu.vector_store %arg5[%c0_11, %c0_12], %16 {strides = array<i32>} : memref<8x1xf32, #tpu.memory_space<vmem>>, vector<8x1xf32>,
    %c0_i32_13 = arith.constant 0 : i32
    %18 = arith.cmpi eq, %arg1, %c0_i32_13 : i32
    %19 = arith.extui %18 : i1 to i32
    %c0_i32_14 = arith.constant 0 : i32
    %20 = arith.cmpi ne, %19, %c0_i32_14 : i32
    scf.if %20 {
      %c0_15 = arith.constant 0 : index
      %c0_16 = arith.constant 0 : index
      %21 = vector.load %arg4[%c0_15, %c0_16] : memref<8x1xf32, #tpu.memory_space<vmem>>, vector<8x1xf32>
      %c0_17 = arith.constant 0 : index
      %c0_18 = arith.constant 0 : index
      %22 = vector.load %arg5[%c0_17, %c0_18] : memref<8x1xf32, #tpu.memory_space<vmem>>, vector<8x1xf32>
      %23 = arith.mulf %21, %21 : vector<8x1xf32>
      %cst_19 = arith.constant 3.906250e-03 : f32
      %24 = vector.broadcast %cst_19 : f32 to vector<8x1xf32>
      %25 = arith.mulf %23, %24 : vector<8x1xf32>
      %26 = arith.subf %22, %25 : vector<8x1xf32>
      %cst_20 = arith.constant 0.00392156886 : f32
      %27 = vector.broadcast %cst_20 : f32 to vector<8x1xf32>
      %28 = arith.mulf %26, %27 : vector<8x1xf32>
      %cst_21 = arith.constant 0.000000e+00 : f32
      %29 = vector.broadcast %cst_21 : f32 to vector<8x1xf32>
      %30 = arith.maximumf %28, %29 : vector<8x1xf32>
      %31 = math.sqrt %30 : vector<8x1xf32>
      %c0_22 = arith.constant 0 : index
      %c0_23 = arith.constant 0 : index
      %32 = vector.load %arg3[%c0_22, %c0_23] : memref<8x1xf32, #tpu.memory_space<vmem>>, vector<8x1xf32>
      tpu.vector_store %arg3[%c0_22, %c0_23], %31 {strides = array<i32>} : memref<8x1xf32, #tpu.memory_space<vmem>>, vector<8x1xf32>,
    } else {
    }
    return
  }
  func.func @transform_0(%arg0: i32, %arg1: i32) -> (i32, i32) {
    %c0_i32 = arith.constant 0 : i32
    return %arg0, %arg1 : i32, i32
  }
  func.func @transform_1(%arg0: i32, %arg1: i32) -> (i32, i32) {
    %c0_i32 = arith.constant 0 : i32
    %c0_i32_0 = arith.constant 0 : i32
    return %arg0, %c0_i32 : i32, i32
  }
}

</mosaic_0001>

<llo_original>
// kernel: tpu_custom_call.1
$region0: #{tpu_custom_call.1}
  #allocation0 [shape = 'u32[]', space=smem, size = 0x4, offset = 0x4, fixed_abs, tag = 'smem constant byte address 0x4 - core index']
  #allocation1 [shape = 'u32[72,128]{1,0:T(1,128)}', space=vmem, size = 0x9000, scoped, tag = 'internal scratch']
  #allocation2 [shape = 'f32[8,1]{1,0:T(8,128)}', space=vmem, size = 0x1000, scoped, tag = 'scratch operand']
  #allocation3 [shape = 'f32[8,1]{1,0:T(8,128)}', space=vmem, size = 0x1000, scoped, tag = 'scratch operand']
  #allocation4 [shape = 'f32[8,1]{1,0:T(8,128)}', space=vmem, size = 0x1000, scoped, tag = 'scratch operand']
  %s0 = inlined_call_operand.hbm [shape: f32[8,256], index: 0, kind: input, shape index: {}]
  %s1 = inlined_call_operand.vmem [shape: f32[8,1], index: 1, kind: output, shape index: {}]
  %s2 = sld [smem:[#allocation0]]
  $region26: #{tpu_custom_call.1} parent=0
    _
  %s4 = ssub.s32 1, %s2
  %s5 = scalar_select 0, %s4, %s2
  $region1: #{tpu_custom_call.1} parent=0
    #allocation5 [shape = 'u8[8192]{0}', space=vmem, size = 0x2000, scoped, tag = 'input window, operand 0, single buffered']
    #allocation6 [shape = 's32[1]{0}', space=sflag, size = 0x4, scoped, tag = 'scoped memory for tpu_custom_call.1']
    %6 = vsyncpa [#allocation6], 0
    // Predicated region
    $region2: #{tpu_custom_call.1} parent=1 // pred_check
      _
    $region3: #{tpu_custom_call.1} parent=1 // pred_check_branch
      %8 = sbr.rel (0) target = $region5
    $region4: #{tpu_custom_call.1} parent=1 // pred_region
      %10 = vsyncadd [#allocation6], 0
      %s12 = sshll.u32 %s0, 4
      %s13 = int_to_ptr.hbm [resolvable:$true] %s12
      %s14 = sshll.u32 [#allocation5], 4
      %s15 = int_to_ptr.vmem [resolvable:$true] %s14
      %17 = dma.hbm_to_vmem [thread:$0]  %s13, 256, %s15, [#allocation6]
    $region5: #{tpu_custom_call.1} parent=1 // pred_fallthru
      _
    // Predicated region
    $region6: #{tpu_custom_call.1} parent=1 // pred_check
      _
    $region7: #{tpu_custom_call.1} parent=1 // pred_check_branch
      %19 = sbr.rel (0) target = $region9
    $region8: #{tpu_custom_call.1} parent=1 // pred_region
      %21 = dma.done [#allocation6], 256
    $region9: #{tpu_custom_call.1} parent=1 // pred_fallthru
      _
    %p22 = scmp.eq.s32.totalorder 0, 0
    // Predicated region
    $region10: #{tpu_custom_call.1} parent=1 // pred_check
      %p23 = pneg %p22
    $region11: #{tpu_custom_call.1} parent=1 // pred_check_branch
      %25 = sbr.rel (%p23) target = $region13
    $region12: #{tpu_custom_call.1} parent=1 // pred_region
      %v26 = vld [vmem:[#allocation5] sm:$0xff]
      %vm27 = vcmask 7168
      %28 = vst.msk [vmem:[#allocation4] sm:$0xff] %vm27, %v26
      %29 = vst.msk [vmem:[#allocation2] sm:$0xff] %vm27, 0.0
      %30 = vst.msk [vmem:[#allocation3] sm:$0xff] %vm27, 0.0
    $region13: #{tpu_custom_call.1} parent=1 // pred_fallthru
      _
    %v31 = vld [vmem:[#allocation4] sm:$0xff]
    %v32 = vld [vmem:[#allocation5] sm:$0xff]
    %v33 = vld [vmem:[#allocation5 + $0x8] sm:$0xff]
    %35 = vset.pattern.permute.xlu0 0
    %36 = vperm.xlu0 %35, %v31
    %v37 = vpop.permute.xlu0 %36
    %v39 = vsub.f32 %v32, %v37
    %v40 = vsub.f32 %v33, %v37
    %v41 = vld [vmem:[#allocation2] sm:$0xff]
    %v42 = vadd.f32 %v39, %v40
    %43 = vadd.xlane.f32.xlu0 %v42
    %v44 = vpop.xlane.xlu0 %43
    %v45 = vadd.f32 %v41, %v44
    %vm46 = vcmask 7168
    %47 = vst.msk [vmem:[#allocation2] sm:$0xff] %vm46, %v45
    %v48 = vld [vmem:[#allocation3] sm:$0xff]
    %v49 = vmul.f32 %v39, %v39
    %v50 = vmul.f32 %v40, %v40
    %v51 = vadd.f32 %v49, %v50
    %52 = vadd.xlane.f32.xlu0 %v51
    %v53 = vpop.xlane.xlu0 %52
    %v54 = vadd.f32 %v48, %v53
    %55 = vst.msk [vmem:[#allocation3] sm:$0xff] %vm46, %v54
    // Predicated region
    $region14: #{tpu_custom_call.1} parent=1 // pred_check
      %p56 = pneg %p22
    $region15: #{tpu_custom_call.1} parent=1 // pred_check_branch
      %58 = sbr.rel (%p56) target = $region17
    $region16: #{tpu_custom_call.1} parent=1 // pred_region
      %v59 = vld [vmem:[#allocation2] sm:$0xff]
      %v60 = vld [vmem:[#allocation3] sm:$0xff]
      %v61 = vmul.f32 %v59, %v59
      %v62 = vmul.f32 %v61, 0.00390625
      %v63 = vsub.f32 %v60, %v62
      %v64 = vmul.f32 %v63, 0.003921569
      %v65 = vmax.f32 %v64, 0.0
      %v66 = vrsqrt.pop %v65
      %v67 = vmul.f32 %v66, %v65
      %v68 = vmul.f32 %v67, %v66
      %v69 = vmul.f32 0.5, %v68
      %v70 = vsub.f32 1.5, %v69
      %v71 = vmul.f32 %v66, %v70
      %v72 = vmul.f32 %v65, %v71
      %vm73 = vcmp.eq.f32.partialorder %v65, inf
      %v74 = vsel %vm73, %v65, %v72
      %vm75 = vcmp.eq.f32.partialorder %v65, 0.0
      %v76 = vand.u32 %v65, 2147483648
      %v77 = vsel %vm75, %v76, %v74
      %78 = vst.msk [vmem:[%s1] sm:$0xff] %vm46, %v77
    $region17: #{tpu_custom_call.1} parent=1 // pred_fallthru
      _
    // Predicated region
    $region18: #{tpu_custom_call.1} parent=1 // pred_check
      _
    $region19: #{tpu_custom_call.1} parent=1 // pred_check_branch
      %80 = sbr.rel (0) target = $region21
    $region20: #{tpu_custom_call.1} parent=1 // pred_region
      _
    $region21: #{tpu_custom_call.1} parent=1 // pred_fallthru
      _
    // Predicated region
    $region22: #{tpu_custom_call.1} parent=1 // pred_check
      _
    $region23: #{tpu_custom_call.1} parent=1 // pred_check_branch
      %82 = sbr.rel (0) target = $region25
    $region24: #{tpu_custom_call.1} parent=1 // pred_region
      _
    $region25: #{tpu_custom_call.1} parent=1 // pred_fallthru
      _
    %83 = vsyncpa [#allocation6], 1

</llo_original>
